<compile_context>
chip_gen: v6e
topology: v6e:2x2x1
jax: 0.10.0
libtpu: 0.0.40
codegen_flags: <defaults>
</compile_context>

<pallas_src>
import functools
import math

import numpy as np
import jax
import jax.numpy as jnp
from jax.experimental import pallas as pl
from jax.experimental.pallas import tpu as pltpu


# ----------------------------------------------------------------------------
# Host-side deterministic parameters (glue)
# ----------------------------------------------------------------------------

_COS1_SQ = float(math.cos(math.pi / 180.0) ** 2)
_LOG2E = 1.4426950408889634            # 1 / ln(2)
_SQRT1_2 = float(1.0 / math.sqrt(2.0))

_MOTION_TAPS = (0.054488685, 0.244201342, 0.402619947, 0.244201342, 0.054488685)

_N_SV = 16
_GAMMA = 0.05
_RHO = 0.1
_SCORE_SLOPE = 25.0
_SCORE_INTERCEPT = 50.0


def _gaussian_taps(n):
    sigma = n / 5.0
    c = (n - 1) / 2.0
    t = np.arange(n, dtype=np.float64)
    g = np.exp(-0.5 * ((t - c) / sigma) ** 2)
    g = g / g.sum()
    return tuple(float(v) for v in g)


_VIF_TAPS = tuple(_gaussian_taps(2 ** (4 - s) + 1) for s in range(4))


def _make_svm_params():
    # TODO(synk): synthetic deterministic nu-SVR model (not the libvmaf json).
    rng = np.random.RandomState(0)
    sv = rng.uniform(0.0, 1.0, size=(_N_SV, 6)).astype(np.float32)
    coef = rng.uniform(-1.0, 1.0, size=(_N_SV, 1)).astype(np.float32)
    slope = np.array([1.0, 0.05, 1.0, 1.0, 1.0, 1.0], np.float32)[None, :]
    intercept = np.zeros((1, 6), np.float32)
    return sv, coef, slope, intercept


# ----------------------------------------------------------------------------
# Generation-aware VMEM budget
# ----------------------------------------------------------------------------

_VMEM_LIMIT_CACHE = [None]


def _get_vmem_limit():
    if _VMEM_LIMIT_CACHE[0] is None:
        try:
            cap = int(pltpu.get_tpu_info().vmem_capacity_bytes)
        except Exception:
            cap = 64 * 1024 * 1024        # conservative fallback (safe on v7x)
        # Leave Mosaic headroom: ~48 MB on v7x (64 MiB), ~110 MB on v5e/v6e.
        _VMEM_LIMIT_CACHE[0] = max(32 * 1024 * 1024,
                                   min(cap - 16 * 1024 * 1024, 110 * 1024 * 1024))
    return _VMEM_LIMIT_CACHE[0]


def _params(dims):
    return pltpu.CompilerParams(dimension_semantics=dims,
                                vmem_limit_bytes=_get_vmem_limit())


# ----------------------------------------------------------------------------
# Shared in-kernel helpers
# ----------------------------------------------------------------------------

def _scalar_tile(val):
    return jnp.full((1, 1, 128), val, jnp.float32)


def _scalar_spec():
    return pl.BlockSpec((1, 1, 128), lambda i: (i, 0, 0))


def _scalar_shape(n):
    return jax.ShapeDtypeStruct((n, 1, 128), jnp.float32)


def _build_sym_pad(dst_ref, x, p):
    """Write x into the interior of dst_ref and mirror (half-sample symmetric)
    halos of width p with small static-slice copies (no XLA jnp.pad pass)."""
    h, w = x.shape
    dst_ref[p:p + h, p:p + w] = x
    # Row halos (full width; halo columns fixed up by the column mirror below).
    for j in range(p):
        dst_ref[p - 1 - j:p - j, :] = dst_ref[p + j:p + j + 1, :]
        dst_ref[p + h + j:p + h + j + 1, :] = dst_ref[p + h - 1 - j:p + h - j, :]
    # Column halos (full height, sources are interior columns -> corners valid).
    for j in range(p):
        dst_ref[:, p - 1 - j:p - j] = dst_ref[:, p + j:p + j + 1]
        dst_ref[:, p + w + j:p + w + j + 1] = dst_ref[:, p + w - 1 - j:p + w - j]


def _sep_conv_sym(src_ref, rowbuf_ref, taps, pad, h, w):
    """'Same' separable conv on a symmetric-padded VMEM scratch.
    Row pass: sublane-offset REF slices with symmetric tap pairing.
    Column pass: staged through rowbuf so tap shifts are lane-offset ref loads."""
    n = len(taps)
    r = n // 2
    off = pad - r               # pad >= r always holds here
    acc = src_ref[off + r:off + r + h, :] * taps[r]
    for t in range(r):
        acc = acc + (src_ref[off + t:off + t + h, :]
                     + src_ref[off + n - 1 - t:off + n - 1 - t + h, :]) * taps[t]
    rowbuf_ref[...] = acc       # (h, w + 2*pad)
    out = rowbuf_ref[:, off + r:off + r + w] * taps[r]
    for t in range(r):
        out = out + (rowbuf_ref[:, off + t:off + t + w]
                     + rowbuf_ref[:, off + n - 1 - t:off + n - 1 - t + w]) * taps[t]
    return out


def _even_rows_sel(rows_out, rows_in):
    # sel[i, j] = 1 iff j == 2*i  (even-row selection, applied from the left)
    i = jax.lax.broadcasted_iota(jnp.int32, (rows_out, rows_in), 0)
    j = jax.lax.broadcasted_iota(jnp.int32, (rows_out, rows_in), 1)
    return (j == 2 * i).astype(jnp.float32)


def _even_cols_sel(cols_in, cols_out):
    # sel[j, i] = 1 iff j == 2*i  (even-col selection, applied from the right)
    j = jax.lax.broadcasted_iota(jnp.int32, (cols_in, cols_out), 0)
    i = jax.lax.broadcasted_iota(jnp.int32, (cols_in, cols_out), 1)
    return (j == 2 * i).astype(jnp.float32)


def _decimate2(x):
    """[::2, ::2] decimation done in-kernel on the MXU (lane-dense output).
    TODO(synk): could fold the taps into banded matmuls to also cut tap FMAs."""
    h, w = x.shape
    h2, w2 = (h + 1) // 2, (w + 1) // 2
    sr = _even_rows_sel(h2, h)
    sc = _even_cols_sel(w, w2)
    y = jnp.dot(sr, x, preferred_element_type=jnp.float32)
    return jnp.dot(y, sc, preferred_element_type=jnp.float32)


def _haar_row_mats(h2, h):
    i = jax.lax.broadcasted_iota(jnp.int32, (h2, h), 0)
    j = jax.lax.broadcasted_iota(jnp.int32, (h2, h), 1)
    a = (j == 2 * i).astype(jnp.float32)
    b = (j == 2 * i + 1).astype(jnp.float32)
    return (a + b) * _SQRT1_2, (a - b) * _SQRT1_2


def _haar_col_mats(w, w2):
    j = jax.lax.broadcasted_iota(jnp.int32, (w, w2), 0)
    i = jax.lax.broadcasted_iota(jnp.int32, (w, w2), 1)
    a = (j == 2 * i).astype(jnp.float32)
    b = (j == 2 * i + 1).astype(jnp.float32)
    return (a + b) * _SQRT1_2, (a - b) * _SQRT1_2


# ----------------------------------------------------------------------------
# RGB -> Y (H-tiled, cast inside the kernel)
# ----------------------------------------------------------------------------

def _rgb2y_kernel(x_ref, y_ref):
    # BT.601 luma from [0,255] RGB; cast happens in-kernel so uint8 inputs are
    # not expanded in HBM by an external convert pass.
    r = x_ref[0, 0].astype(jnp.float32)
    g = x_ref[0, 1].astype(jnp.float32)
    b = x_ref[0, 2].astype(jnp.float32)
    y_ref[0] = 0.299 * r + 0.587 * g + 0.114 * b


def rgb_to_y(x):
    n, c, h, w = x.shape
    th = h if h <= 256 else 256
    grid = (n, pl.cdiv(h, th))
    return pl.pallas_call(
        _rgb2y_kernel,
        out_shape=jax.ShapeDtypeStruct((n, h, w), jnp.float32),
        grid_spec=pltpu.PrefetchScalarGridSpec(
            num_scalar_prefetch=0, grid=grid,
            in_specs=[pl.BlockSpec((1, c, th, w), lambda i, t: (i, 0, t, 0))],
            out_specs=pl.BlockSpec((1, th, w), lambda i, t: (i, t, 0))),
        compiler_params=_params(("parallel", "parallel")),
    )(x)


# ----------------------------------------------------------------------------
# Motion (fused pad + blur + SAD, previous blurred frame carried in VMEM scratch)
# ----------------------------------------------------------------------------

def _motion_kernel(x_ref, o_ref, xpad_ref, rowbuf_ref, prev_ref, *, h, w):
    i = pl.program_id(0)
    _build_sym_pad(xpad_ref, x_ref[0], 2)
    blur = _sep_conv_sym(xpad_ref, rowbuf_ref, _MOTION_TAPS, 2, h, w)
    inv = 1.0 / float(h * w)

    @pl.when(i == 0)
    def _():
        o_ref[...] = _scalar_tile(0.0)

    @pl.when(i > 0)
    def _():
        sad = jnp.sum(jnp.abs(blur - prev_ref[...])) * inv
        o_ref[...] = _scalar_tile(sad)

    prev_ref[...] = blur


def compute_motion2(ref_y):
    # TODO(synk): v7x megacore split (two interleaved frame chains) not done;
    #             frame axis must stay 'arbitrary' because of the prev_ref carry.
    n, h, w = ref_y.shape
    kern = functools.partial(_motion_kernel, h=h, w=w)
    sad_t = pl.pallas_call(
        kern,
        out_shape=_scalar_shape(n),
        grid_spec=pltpu.PrefetchScalarGridSpec(
            num_scalar_prefetch=0, grid=(n,),
            in_specs=[pl.BlockSpec((1, h, w), lambda i: (i, 0, 0))],
            out_specs=_scalar_spec(),
            scratch_shapes=[pltpu.VMEM((h + 4, w + 4), jnp.float32),
                            pltpu.VMEM((h, w + 4), jnp.float32),
                            pltpu.VMEM((h, w), jnp.float32)]),
        compiler_params=_params(("arbitrary",)),    # sequential carry in scratch
    )(ref_y)
    sad = sad_t[:, 0, 0]                                   # sad[0] == 0
    # motion2[i] = min(sad[i], sad[i+1]); last frame keeps its own sad.
    motion2 = jnp.minimum(sad, jnp.concatenate([sad[1:], sad[-1:]], axis=0))
    return motion2[:, None]                                # (N, 1)


# ----------------------------------------------------------------------------
# VIF (per-scale stats + fused, decimated next-scale filter; in-kernel padding)
# ----------------------------------------------------------------------------

def _vif_scale_kernel(r_ref, d_ref, *rest, taps, taps_next, h, w):
    if taps_next is not None:
        num_ref, den_ref, rn_ref, dn_ref, rp_pad, dp_pad, prodbuf, rowbuf = rest
    else:
        num_ref, den_ref, rp_pad, dp_pad, prodbuf, rowbuf = rest
    pad = len(taps) // 2

    _build_sym_pad(rp_pad, r_ref[0], pad)
    _build_sym_pad(dp_pad, d_ref[0], pad)

    conv = functools.partial(_sep_conv_sym, rowbuf_ref=rowbuf,
                             taps=taps, pad=pad, h=h, w=w)
    mu1 = conv(rp_pad)
    mu2 = conv(dp_pad)

    # Second moments stay f32 (cancellation at |x|<=255 is not bf16-safe).
    rpv = rp_pad[...]
    dpv = dp_pad[...]
    prodbuf[...] = rpv * rpv
    s1 = jnp.maximum(conv(prodbuf) - mu1 * mu1, 0.0)
    prodbuf[...] = dpv * dpv
    s2 = jnp.maximum(conv(prodbuf) - mu2 * mu2, 0.0)
    prodbuf[...] = rpv * dpv
    s12 = conv(prodbuf) - mu1 * mu2

    eps = 1e-10
    sigma_nsq = 2.0
    g0 = s12 / (s1 + eps)
    valid = jnp.logical_and(jnp.logical_and(s1 >= eps, s2 >= eps), g0 >= 0.0)
    g = jnp.where(valid, g0, 0.0)
    sv = jnp.maximum(jnp.where(valid, s2 - g0 * s12, s2), eps)
    s1c = jnp.where(s1 < eps, 0.0, s1)

    num = jnp.sum(jnp.log(1.0 + g * g * s1c / (sv + sigma_nsq))) * _LOG2E
    den = jnp.sum(jnp.log(1.0 + s1c / sigma_nsq)) * _LOG2E
    num_ref[...] = _scalar_tile(num)
    den_ref[...] = _scalar_tile(den)

    if taps_next is not None:
        # Next-scale decimation filter reuses the already-padded scratches
        # (len(taps_next)//2 <= pad); decimated (h/2, w/2) frames are emitted
        # directly (even-row/col selection on the MXU), no XLA [::2, ::2] pass.
        cnext = functools.partial(_sep_conv_sym, rowbuf_ref=rowbuf,
                                  taps=taps_next, pad=pad, h=h, w=w)
        rn_ref[0] = _decimate2(cnext(rp_pad))
        dn_ref[0] = _decimate2(cnext(dp_pad))


def _vif_scale(r, d, taps, taps_next):
    # TODO(synk): H-tile with halos for HD frames (whole-frame blocks here).
    n, h, w = r.shape
    pad = len(taps) // 2
    h2, w2 = (h + 1) // 2, (w + 1) // 2
    kern = functools.partial(_vif_scale_kernel, taps=taps, taps_next=taps_next,
                             h=h, w=w)
    out_shape = [_scalar_shape(n), _scalar_shape(n)]
    out_specs = [_scalar_spec(), _scalar_spec()]
    if taps_next is not None:
        out_shape += [jax.ShapeDtypeStruct((n, h2, w2), jnp.float32)] * 2
        out_specs += [pl.BlockSpec((1, h2, w2), lambda i: (i, 0, 0))] * 2
    scratch = [pltpu.VMEM((h + 2 * pad, w + 2 * pad), jnp.float32),   # padded ref
               pltpu.VMEM((h + 2 * pad, w + 2 * pad), jnp.float32),   # padded dist
               pltpu.VMEM((h + 2 * pad, w + 2 * pad), jnp.float32),   # padded product
               pltpu.VMEM((h, w + 2 * pad), jnp.float32)]             # row-pass buf
    return pl.pallas_call(
        kern,
        out_shape=tuple(out_shape),
        grid_spec=pltpu.PrefetchScalarGridSpec(
            num_scalar_prefetch=0, grid=(n,),
            in_specs=[pl.BlockSpec((1, h, w), lambda i: (i, 0, 0)),
                      pl.BlockSpec((1, h, w), lambda i: (i, 0, 0))],
            out_specs=tuple(out_specs),
            scratch_shapes=scratch),
        compiler_params=_params(("parallel",)),
    )(r, d)


def compute_vif_features(ref_y, dist_y):
    # TODO(synk): 'same' symmetric filtering is used instead of libvmaf's 'valid'.
    r, d = ref_y, dist_y
    feats = []
    for s in range(4):
        taps = _VIF_TAPS[s]
        taps_next = _VIF_TAPS[s + 1] if s < 3 else None
        outs = _vif_scale(r, d, taps, taps_next)
        num = outs[0][:, 0, 0]
        den = outs[1][:, 0, 0]
        feats.append(num / jnp.maximum(den, 1e-10))
        if s < 3:
            r, d = outs[2], outs[3]            # already decimated in-kernel
    return jnp.stack(feats, axis=-1)                       # (N, 4)


# ----------------------------------------------------------------------------
# ADM (all scales fused in one kernel; compacted Haar subbands via MXU pairing
# matmuls, so the decouple/cube/reduce stage sees no masks and 4x less data)
# ----------------------------------------------------------------------------

def _adm_kernel(r_ref, d_ref, num_ref, den_ref, *, n_scales):
    r = r_ref[0]
    d = d_ref[0]
    num_sum = jnp.float32(0.0)
    den_sum = jnp.float32(0.0)
    third = 1.0 / 3.0

    for _ in range(n_scales):
        h, w = r.shape
        h2, w2 = h // 2, w // 2
        p_lo, p_hi = _haar_row_mats(h2, h)     # (h2, h) pairing matrices
        q_lo, q_hi = _haar_col_mats(w, w2)     # (w, w2) pairing matrices

        def dwt(x):
            lo = jnp.dot(p_lo, x, preferred_element_type=jnp.float32)
            hi = jnp.dot(p_hi, x, preferred_element_type=jnp.float32)
            a = jnp.dot(lo, q_lo, preferred_element_type=jnp.float32)
            hh = jnp.dot(lo, q_hi, preferred_element_type=jnp.float32)
            v = jnp.dot(hi, q_lo, preferred_element_type=jnp.float32)
            dd = jnp.dot(hi, q_hi, preferred_element_type=jnp.float32)
            return a, hh, v, dd

        rA, rH, rV, rD = dwt(r)
        dA, dH, dV, dD = dwt(d)

        # DLM decoupling with 1-degree angle test (atan-free formulation).
        ot_dp = rH * dH + rV * dV
        o_mag = rH * rH + rV * rV
        t_mag = dH * dH + dV * dV
        angle_ok = jnp.logical_and(ot_dp >= 0.0,
                                   ot_dp * ot_dp >= _COS1_SQ * o_mag * t_mag)

        def decouple(rs, ds):
            safe = jnp.where(jnp.abs(rs) > 1e-12, rs,
                             jnp.where(rs >= 0.0, 1e-12, -1e-12))
            rest = jnp.clip(ds / safe, 0.0, 1.0) * rs
            return jnp.where(angle_ok, ds, rest)

        for rs, ds in ((rH, dH), (rV, dV), (rD, dD)):
            rest = jnp.abs(decouple(rs, ds))
            ra = jnp.abs(rs)
            num_sum = num_sum + jnp.exp(
                jnp.log(jnp.sum(rest * rest * rest) + 1e-10) * third)
            den_sum = den_sum + jnp.exp(
                jnp.log(jnp.sum(ra * ra * ra) + 1e-10) * third)

        # Approximation bands feed the next scale without leaving VMEM.
        r, d = rA, dA

    num_ref[...] = _scalar_tile(num_sum)
    den_ref[...] = _scalar_tile(den_sum)


def compute_adm_score(ref_y, dist_y):
    # TODO(synk): H-tile scale 0 for HD frames on v7x; scales 1-3 stay fused.
    n, h, w = ref_y.shape
    n_scales = 0
    hh, ww = h, w
    while n_scales < 4 and hh >= 2 and ww >= 2:
        n_scales += 1
        hh //= 2
        ww //= 2
    kern = functools.partial(_adm_kernel, n_scales=n_scales)
    num_t, den_t = pl.pallas_call(
        kern,
        out_shape=(_scalar_shape(n), _scalar_shape(n)),
        grid_spec=pltpu.PrefetchScalarGridSpec(
            num_scalar_prefetch=0, grid=(n,),
            in_specs=[pl.BlockSpec((1, h, w), lambda i: (i, 0, 0)),
                      pl.BlockSpec((1, h, w), lambda i: (i, 0, 0))],
            out_specs=(_scalar_spec(), _scalar_spec())),
        compiler_params=_params(("parallel",)),
    )(ref_y, dist_y)
    num = num_t[:, 0, 0]
    den = den_t[:, 0, 0]
    adm2 = (num + 1e-4) / (den + 1e-4)
    return adm2[:, None]                                   # (N, 1)


# ----------------------------------------------------------------------------
# SVM (nu-SVR with RBF kernel)
# ----------------------------------------------------------------------------

def _svm_kernel(f_ref, slope_ref, icpt_ref, svt_ref, svsq_ref, coef_ref, o_ref,
                *, clip_score):
    x = f_ref[...] * slope_ref[...] + icpt_ref[...]           # (N, 6)
    xsq = jnp.sum(x * x, axis=-1, keepdims=True)              # (N, 1)
    cross = jnp.dot(x, svt_ref[...], preferred_element_type=jnp.float32)
    d2 = xsq + svsq_ref[...] - 2.0 * cross
    k = jnp.exp(-_GAMMA * d2)
    pred = jnp.dot(k, coef_ref[...], preferred_element_type=jnp.float32)
    score = (pred + _RHO) * _SCORE_SLOPE + _SCORE_INTERCEPT
    if clip_score:
        score = jnp.clip(score, 0.0, 100.0)
    o_ref[...] = score


def svm_predict(features, clip_score=False):
    # TODO(synk): tiny matmuls below MXU tile; absolute cost negligible.
    n = features.shape[0]
    sv, coef, slope, icpt = _make_svm_params()
    svt = jnp.asarray(sv.T)                                   # (6, S)
    svsq = jnp.asarray(np.sum(sv * sv, axis=1, keepdims=True).T)  # (1, S)
    kern = functools.partial(_svm_kernel, clip_score=clip_score)
    return pl.pallas_call(
        kern,
        out_shape=jax.ShapeDtypeStruct((n, 1), jnp.float32),
        grid_spec=pltpu.PrefetchScalarGridSpec(
            num_scalar_prefetch=0, grid=(1,),
            in_specs=[pl.BlockSpec((n, 6), lambda i: (0, 0)),
                      pl.BlockSpec((1, 6), lambda i: (0, 0)),
                      pl.BlockSpec((1, 6), lambda i: (0, 0)),
                      pl.BlockSpec((6, _N_SV), lambda i: (0, 0)),
                      pl.BlockSpec((1, _N_SV), lambda i: (0, 0)),
                      pl.BlockSpec((_N_SV, 1), lambda i: (0, 0))],
            out_specs=pl.BlockSpec((n, 1), lambda i: (0, 0))),
        compiler_params=pltpu.CompilerParams(vmem_limit_bytes=_get_vmem_limit()),
    )(features, jnp.asarray(slope), jnp.asarray(icpt), svt, svsq,
      jnp.asarray(coef))


# ----------------------------------------------------------------------------
# VMAF forward (mirrors VMAF.forward / compute_vmaf_score)
# ----------------------------------------------------------------------------

def vmaf_forward(ref, dist, *, temporal_pooling=False, enable_motion=True,
                 clip_score=False):
    """ref, dist: [N, 1|3, H, W] in [0,255]. Returns [N,1] (or [1] if pooled)."""
    if ref.shape[1] == 3 and dist.shape[1] == 3:
        ref_y = rgb_to_y(ref)
        dist_y = rgb_to_y(dist)
    else:
        ref_y = ref[:, 0].astype(jnp.float32)
        dist_y = dist[:, 0].astype(jnp.float32)

    n = ref_y.shape[0]
    if enable_motion:
        motion2 = compute_motion2(ref_y)                       # (N, 1)
    else:
        motion2 = jnp.zeros((n, 1), jnp.float32)
    adm = compute_adm_score(ref_y, dist_y)                     # (N, 1)
    vif = compute_vif_features(ref_y, dist_y)                  # (N, 4)

    feats = jnp.concatenate([adm, motion2, vif], axis=-1)      # (N, 6)
    score = svm_predict(feats, clip_score=clip_score)          # (N, 1)
    if temporal_pooling:
        score = jnp.mean(score, axis=0)
    return score


if __name__ == "__main__":
    key = jax.random.PRNGKey(0)
    k1, k2 = jax.random.split(key)
    n, c, h, w = 2, 3, 32, 32
    ref = jax.random.uniform(k1, (n, c, h, w), jnp.float32, 0.0, 255.0)
    noise = 10.0 * jax.random.normal(k2, (n, c, h, w), jnp.float32)
    dist = jnp.clip(ref + noise, 0.0, 255.0)

    score = vmaf_forward(ref, dist)
    score = jax.block_until_ready(score)
    assert score.shape == (n, 1)
    assert bool(jnp.all(jnp.isfinite(score)))
    print("KERNEL_OK")
</pallas_src>

<mosaic_0001>
module attributes {stable_mosaic.version = 11 : i64} {
  func.func @_rgb2y_kernel(%arg0: i32, %arg1: i32, %arg2: memref<1x3x32x32xf32, #tpu.memory_space<vmem>>, %arg3: memref<1x32x32xf32, #tpu.memory_space<vmem>>) attributes {dimension_semantics = [#tpu.dimension_semantics<parallel>, #tpu.dimension_semantics<parallel>], iteration_bounds = array<i64: 2, 1>, scalar_prefetch = 0 : i64, scratch_operands = 0 : i64, tpu.core_type = #tpu.core_type<tc>, window_params = [{transform_indices = @transform_0, window_bounds = array<i64: 1, 3, 32, 32>}, {transform_indices = @transform_1, window_bounds = array<i64: 1, 32, 32>}]} {
    %c0 = arith.constant 0 : index
    %c0_0 = arith.constant 0 : index
    %c0_1 = arith.constant 0 : index
    %c0_2 = arith.constant 0 : index
    %0 = vector.load %arg2[%c0, %c0_0, %c0_1, %c0_2] : memref<1x3x32x32xf32, #tpu.memory_space<vmem>>, vector<1x1x32x32xf32>
    %1 = vector.shape_cast %0 : vector<1x1x32x32xf32> to vector<32x32xf32>
    %c0_3 = arith.constant 0 : index
    %c1 = arith.constant 1 : index
    %c0_4 = arith.constant 0 : index
    %c0_5 = arith.constant 0 : index
    %2 = vector.load %arg2[%c0_3, %c1, %c0_4, %c0_5] : memref<1x3x32x32xf32, #tpu.memory_space<vmem>>, vector<1x1x32x32xf32>
    %3 = vector.shape_cast %2 : vector<1x1x32x32xf32> to vector<32x32xf32>
    %c0_6 = arith.constant 0 : index
    %c2 = arith.constant 2 : index
    %c0_7 = arith.constant 0 : index
    %c0_8 = arith.constant 0 : index
    %4 = vector.load %arg2[%c0_6, %c2, %c0_7, %c0_8] : memref<1x3x32x32xf32, #tpu.memory_space<vmem>>, vector<1x1x32x32xf32>
    %5 = vector.shape_cast %4 : vector<1x1x32x32xf32> to vector<32x32xf32>
    %cst = arith.constant 2.990000e-01 : f32
    %6 = vector.broadcast %cst : f32 to vector<32x32xf32>
    %7 = arith.mulf %6, %1 : vector<32x32xf32>
    %cst_9 = arith.constant 5.870000e-01 : f32
    %8 = vector.broadcast %cst_9 : f32 to vector<32x32xf32>
    %9 = arith.mulf %8, %3 : vector<32x32xf32>
    %10 = arith.addf %7, %9 : vector<32x32xf32>
    %cst_10 = arith.constant 1.140000e-01 : f32
    %11 = vector.broadcast %cst_10 : f32 to vector<32x32xf32>
    %12 = arith.mulf %11, %5 : vector<32x32xf32>
    %13 = arith.addf %10, %12 : vector<32x32xf32>
    %c0_11 = arith.constant 0 : index
    %c0_12 = arith.constant 0 : index
    %c0_13 = arith.constant 0 : index
    %14 = vector.load %arg3[%c0_11, %c0_12, %c0_13] : memref<1x32x32xf32, #tpu.memory_space<vmem>>, vector<1x32x32xf32>
    %15 = vector.shape_cast %14 : vector<1x32x32xf32> to vector<32x32xf32>
    %16 = vector.shape_cast %13 : vector<32x32xf32> to vector<1x32x32xf32>
    tpu.vector_store %arg3[%c0_11, %c0_12, %c0_13], %16 {strides = array<i32>} : memref<1x32x32xf32, #tpu.memory_space<vmem>>, vector<1x32x32xf32>,
    return
  }
  func.func @transform_0(%arg0: i32, %arg1: i32) -> (i32, i32, i32, i32) {
    %c0_i32 = arith.constant 0 : i32
    %c0_i32_0 = arith.constant 0 : i32
    %c0_i32_1 = arith.constant 0 : i32
    return %arg0, %c0_i32, %arg1, %c0_i32_0 : i32, i32, i32, i32
  }
  func.func @transform_1(%arg0: i32, %arg1: i32) -> (i32, i32, i32) {
    %c0_i32 = arith.constant 0 : i32
    %c0_i32_0 = arith.constant 0 : i32
    return %arg0, %arg1, %c0_i32 : i32, i32, i32
  }
}

</mosaic_0001>

<llo_original>
// kernel: tpu_custom_call.1
$region0: #{tpu_custom_call.1}
  #allocation0 [shape = 'u32[]', space=smem, size = 0x4, offset = 0x4, fixed_abs, tag = 'smem constant byte address 0x4 - core index']
  #allocation1 [shape = 'u32[144,128]{1,0:T(1,128)}', space=vmem, size = 0x12000, scoped, tag = 'internal scratch']
  %s0 = inlined_call_operand.hbm [shape: f32[2,3,32,32], index: 0, kind: input, shape index: {}]
  %s1 = inlined_call_operand.hbm [shape: f32[2,32,32], index: 1, kind: output, shape index: {}]
  %s2 = sld [smem:[#allocation0]]
  $region41: #{tpu_custom_call.1} parent=0
    _
  %s4 = ssub.s32 1, %s2
  %s5 = scalar_select 0, %s4, %s2
  $region1: #{tpu_custom_call.1} parent=0
    #allocation2 [shape = 'u8[98304]{0}', space=vmem, size = 0x18000, scoped, tag = 'input window, operand 0']
    #allocation3 [shape = 's32[2]{0}', space=sflag, size = 0x8, scoped, tag = 'scoped memory for tpu_custom_call.1']
    #allocation4 [shape = 's32[2]{0}', space=sflag, size = 0x8, scoped, tag = 'scoped memory for tpu_custom_call.1']
    #allocation5 [shape = 'u8[32768]{0}', space=vmem, size = 0x8000, scoped, tag = 'output window, operand 0']
    %6 = vsyncpa [#allocation3], 0
    %s7 = scalar_lea.sflag [#allocation3], 1
    %8 = vsyncpa %s7, 0
    %9 = vsyncpa [#allocation4], 0
    %s10 = scalar_lea.sflag [#allocation4], 1
    %11 = vsyncpa %s10, 0
    loop: start=0, step=1, limit=4
    $region2: #{tpu_custom_call.1} parent=1 // loop_pre_header
      _
    $region3: #{tpu_custom_call.1} parent=1 // loop_header
      %s13 = sphi 0, %s17
      %p14 = scmp.ge.s32.totalorder %s13, 4
      %s20 = sphi 0, %s32
      %s21 = sphi 0, %s28
      %s22 = sphi 0, %s20
      %s23 = sphi 0, %s21
      %s24 = sphi 0, %s22
      %s25 = sphi 0, %s23
      %s37 = sphi 0, %s39
      %s40 = sphi 0, %s37
      %s41 = sphi 0, %s40
      %s57 = sphi 0, %s41
      %s65 = sphi 0, %s67
      %s68 = sphi 0, %s65
      %s69 = sphi 0, %s68
      %s85 = sphi 0, %s69
    $region4: #{tpu_custom_call.1} parent=1 // loop_header_branch
      %16 = sbr.rel (%p14) target = $region8
    $region5: #{tpu_custom_call.1} parent=1 // loop_body
      %s18 = ssub.s32 %s13, 1
      %s19 = ssub.s32 %s13, 2
      %s26 = sadd.s32 1, %s21
      %p27 = scmp.ge.s32.totalorder %s26, 1
      %s28 = scalar_select %p27, 0, %s26
      %s29 = sadd.s32 1, %s20
      %s30 = scalar_select %p27, %s29, %s20
      %p31 = scmp.ge.s32.totalorder %s30, 2
      %s32 = scalar_select %p31, 0, %s30
      %s33 = ssub.s32 %s20, %s32
      %s34 = ssub.s32 %s21, %s28
      %s35 = sor.u32 %s33, %s34
      %p36 = scmp.eq.s32.totalorder %s35, 0
      %s38 = sadd.s32 %s37, 1
      %s39 = scalar_select %p36, %s37, %s38
      %p42 = pneg %p36
      %p43 = scmp.eq.s32.totalorder %s13, 1
      %p44 = por %p42, %p43
      %p45 = scmp.ne.s32.totalorder %s37, %s40
      %p46 = scmp.eq.s32.totalorder %s13, 0
      %p47 = por %p45, %p46
      %p48 = scmp.ne.s32.totalorder %s37, %s40
      %p49 = scmp.eq.s32.totalorder %s18, 1
      %p50 = por %p48, %p49
      %p51 = scmp.ne.s32.totalorder %s40, %s41
      %p52 = scmp.eq.s32.totalorder %s18, 0
      %p53 = por %p51, %p52
      %p54 = scmp.ne.s32.totalorder %s40, %s41
      %p55 = scmp.eq.s32.totalorder %s19, 1
      %p56 = por %p54, %p55
      %p58 = scmp.ne.s32.totalorder %s41, %s57
      %p59 = scmp.eq.s32.totalorder %s19, 0
      %p60 = por %p58, %p59
      %s61 = ssub.s32 %s20, %s32
      %s62 = ssub.s32 %s21, %s28
      %s63 = sor.u32 %s61, %s62
      %p64 = scmp.eq.s32.totalorder %s63, 0
      %s66 = sadd.s32 %s65, 1
      %s67 = scalar_select %p64, %s65, %s66
      %p70 = pneg %p64
      %p71 = scmp.eq.s32.totalorder %s13, 1
      %p72 = por %p70, %p71
      %p73 = scmp.ne.s32.totalorder %s65, %s68
      %p74 = scmp.eq.s32.totalorder %s13, 0
      %p75 = por %p73, %p74
      %p76 = scmp.ne.s32.totalorder %s65, %s68
      %p77 = scmp.eq.s32.totalorder %s18, 1
      %p78 = por %p76, %p77
      %p79 = scmp.ne.s32.totalorder %s68, %s69
      %p80 = scmp.eq.s32.totalorder %s18, 0
      %p81 = por %p79, %p80
      %p82 = scmp.ne.s32.totalorder %s68, %s69
      %p83 = scmp.eq.s32.totalorder %s19, 1
      %p84 = por %p82, %p83
      %p86 = scmp.ne.s32.totalorder %s69, %s85
      %p87 = scmp.eq.s32.totalorder %s19, 0
      %p88 = por %p86, %p87
      %p89 = scmp.le.s32.totalorder 1, %s13
      %p90 = scmp.lt.s32.totalorder %s13, 3
      %p91 = pnand %p89, %p90
      %p92 = pneg %p91
      // Predicated region
      $region9: #{tpu_custom_call.1} parent=5 // pred_check
        _
      $region10: #{tpu_custom_call.1} parent=5 // pred_check_branch
        %94 = sbr.rel (%p91) target = $region12
      $region11: #{tpu_custom_call.1} parent=5 // pred_region
        %s95 = ssub.s32 %s13, 1
      $region12: #{tpu_custom_call.1} parent=5 // pred_fallthru
        _
      %p96 = scmp.lt.s32.totalorder %s13, 2
      // Predicated region
      $region13: #{tpu_custom_call.1} parent=5 // pred_check
        %p97 = pneg %p96
      $region14: #{tpu_custom_call.1} parent=5 // pred_check_branch
        %99 = sbr.rel (%p97) target = $region16
      $region15: #{tpu_custom_call.1} parent=5 // pred_region
        // Predicated region
        $region17: #{tpu_custom_call.1} parent=15 // pred_check
          %p100 = pneg %p47
        $region18: #{tpu_custom_call.1} parent=15 // pred_check_branch
          %102 = sbr.rel (%p100) target = $region20
        $region19: #{tpu_custom_call.1} parent=15 // pred_region
          %s103 = sand.u32 %s37, 1
          %s104 = scalar_lea.sflag [#allocation3], %s103
          %s105 = sand.u32 %s37, 1
          %s106 = smul.addr %s105, 96
          %s107 = scalar_lea.vmem [#allocation2], %s106
          %s108 = smul.u32 4, %s21
          %s110 = ssub.s32 1536, 1536
          %111 = vsyncadd %s104, %s110
          %s112 = smul.addr %s20, 12
          %s113 = sadd.s32 %s108, %s112
          %s114 = smul.addr %s113, 128
          %s115 = scalar_lea.hbm %s0, %s114
          %s116 = sshll.u32 %s107, 4
          %s117 = int_to_ptr.vmem [resolvable:$true] %s116
          %122 = dma.hbm_to_vmem [thread:$0]  %s115, 1536, %s117, %s104, 128, 128, 8
        $region20: #{tpu_custom_call.1} parent=15 // pred_fallthru
          _
      $region16: #{tpu_custom_call.1} parent=5 // pred_fallthru
        _
      %p123 = scmp.le.s32.totalorder 1, %s13
      %p124 = scmp.lt.s32.totalorder %s13, 3
      %p125 = pnand %p123, %p124
      %p126 = pneg %p125
      // Predicated region
      $region21: #{tpu_custom_call.1} parent=5 // pred_check
        _
      $region22: #{tpu_custom_call.1} parent=5 // pred_check_branch
        %128 = sbr.rel (%p125) target = $region24
      $region23: #{tpu_custom_call.1} parent=5 // pred_region
        %s129 = ssub.s32 %s13, 1
        %s130 = sand.u32 %s40, 1
        %s131 = scalar_lea.sflag [#allocation3], %s130
        %s132 = sand.u32 %s40, 1
        %s133 = smul.addr %s132, 96
        %s134 = scalar_lea.vmem [#allocation2], %s133
        // Predicated region
        $region25: #{tpu_custom_call.1} parent=23 // pred_check
          %p135 = pneg %p53
        $region26: #{tpu_custom_call.1} parent=23 // pred_check_branch
          %137 = sbr.rel (%p135) target = $region28
        $region27: #{tpu_custom_call.1} parent=23 // pred_region
          %138 = dma.done %s131, 1536
        $region28: #{tpu_custom_call.1} parent=23 // pred_fallthru
          _
        %s139 = sand.u32 %s40, 1
        %s140 = scalar_lea.sflag [#allocation3], %s139
        %s141 = sand.u32 %s40, 1
        %s142 = smul.addr %s141, 96
        %s143 = scalar_lea.vmem [#allocation2], %s142
        %p144 = pneg %p53
        %p145 = pneg %p50
        %p146 = pneg %p81
        %p147 = pneg %p78
        %s148 = sand.u32 %s68, 1
        %s149 = scalar_lea.sflag [#allocation4], %s148
        %s150 = sand.u32 %s68, 1
        %s151 = smul.addr %s150, 32
        %s152 = scalar_lea.vmem [#allocation5], %s151
        %s153 = smul.u32 4, %s23
        %s154 = smul.u32 4, %s23
        %v155 = vld [vmem:[%s134] sm:$0xff]
        %v156 = vld [vmem:[%s134 + $0x8] sm:$0xff]
        %v157 = vld [vmem:[%s134 + $0x10] sm:$0xff]
        %v158 = vld [vmem:[%s134 + $0x18] sm:$0xff]
        %s159 = scalar_lea.vmem %s134, 32 [#allocation2]
        %v160 = vld [vmem:[%s159] sm:$0xff]
        %v161 = vld [vmem:[%s159 + $0x8] sm:$0xff]
        %v162 = vld [vmem:[%s159 + $0x10] sm:$0xff]
        %v163 = vld [vmem:[%s159 + $0x18] sm:$0xff]
        %s164 = scalar_lea.vmem %s134, 64 [#allocation2]
        %v165 = vld [vmem:[%s164] sm:$0xff]
        %v166 = vld [vmem:[%s164 + $0x8] sm:$0xff]
        %v167 = vld [vmem:[%s164 + $0x10] sm:$0xff]
        %v168 = vld [vmem:[%s164 + $0x18] sm:$0xff]
        %v169 = vmul.f32 %v155, 0.299
        %v170 = vmul.f32 %v156, 0.299
        %v171 = vmul.f32 %v157, 0.299
        %v172 = vmul.f32 %v158, 0.299
        %v173 = vmul.f32 %v160, 0.587
        %v174 = vmul.f32 %v161, 0.587
        %v175 = vmul.f32 %v162, 0.587
        %v176 = vmul.f32 %v163, 0.587
        %v177 = vadd.f32 %v169, %v173
        %v178 = vadd.f32 %v170, %v174
        %v179 = vadd.f32 %v171, %v175
        %v180 = vadd.f32 %v172, %v176
        %v181 = vmul.f32 %v165, 0.114
        %v182 = vmul.f32 %v166, 0.114
        %v183 = vmul.f32 %v167, 0.114
        %v184 = vmul.f32 %v168, 0.114
        %v185 = vadd.f32 %v177, %v181
        %v186 = vadd.f32 %v178, %v182
        %v187 = vadd.f32 %v179, %v183
        %v188 = vadd.f32 %v180, %v184
        %vm189 = vcmask 261120
        %190 = vst.msk [vmem:[%s152] sm:$0xff] %vm189, %v185
        %191 = vst.msk [vmem:[%s152 + $0x8] sm:$0xff] %vm189, %v186
        %192 = vst.msk [vmem:[%s152 + $0x10] sm:$0xff] %vm189, %v187
        %193 = vst.msk [vmem:[%s152 + $0x18] sm:$0xff] %vm189, %v188
        %s194 = sand.u32 %s68, 1
        %s195 = scalar_lea.sflag [#allocation4], %s194
        %s196 = sand.u32 %s68, 1
        %s197 = smul.addr %s196, 32
        %s198 = scalar_lea.vmem [#allocation5], %s197
        // Predicated region
        $region29: #{tpu_custom_call.1} parent=23 // pred_check
          %p199 = pneg %p78
        $region30: #{tpu_custom_call.1} parent=23 // pred_check_branch
          %201 = sbr.rel (%p199) target = $region32
        $region31: #{tpu_custom_call.1} parent=23 // pred_region
          %s202 = smul.u32 4, %s23
          %s204 = ssub.s32 512, 512
          %205 = vsyncadd %s195, %s204
          %s206 = smul.addr %s22, 4
          %s207 = sadd.s32 %s202, %s206
          %s208 = smul.addr %s207, 128
          %s209 = scalar_lea.hbm %s1, %s208
          %s210 = sshll.u32 %s198, 4
          %s211 = int_to_ptr.vmem [resolvable:$true] %s210
          %216 = dma.vmem_to_hbm [thread:$0]  %s211, 512, %s209, %s195, 128, 128, 8
        $region32: #{tpu_custom_call.1} parent=23 // pred_fallthru
          _
      $region24: #{tpu_custom_call.1} parent=5 // pred_fallthru
        _
      %p217 = scmp.le.s32.totalorder 2, %s13
      // Predicated region
      $region33: #{tpu_custom_call.1} parent=5 // pred_check
        %p218 = pneg %p217
      $region34: #{tpu_custom_call.1} parent=5 // pred_check_branch
        %220 = sbr.rel (%p218) target = $region36
      $region35: #{tpu_custom_call.1} parent=5 // pred_region
        %s221 = ssub.s32 %s13, 2
        // Predicated region
        $region37: #{tpu_custom_call.1} parent=35 // pred_check
          %p222 = pneg %p84
        $region38: #{tpu_custom_call.1} parent=35 // pred_check_branch
          %224 = sbr.rel (%p222) target = $region40
        $region39: #{tpu_custom_call.1} parent=35 // pred_region
          %s225 = sand.u32 %s69, 1
          %s226 = scalar_lea.sflag [#allocation4], %s225
          %s227 = sand.u32 %s69, 1
          %s228 = smul.addr %s227, 32
          %s229 = scalar_lea.vmem [#allocation5], %s228
          %230 = dma.done %s226, 512
        $region40: #{tpu_custom_call.1} parent=35 // pred_fallthru
          _
      $region36: #{tpu_custom_call.1} parent=5 // pred_fallthru
        _
    $region6: #{tpu_custom_call.1} parent=1 // loop_footer
      %s17 = sadd.s32 1, %s13
    $region7: #{tpu_custom_call.1} parent=1 // loop_footer_branch
      %12 = sbr.rel target = $region3
    $region8: #{tpu_custom_call.1} parent=1 // loop_exit
      _
    %231 = vsyncpa [#allocation3], 1
    %s232 = scalar_lea.sflag [#allocation3], 1
    %233 = vsyncpa %s232, 1
    %234 = vsyncpa [#allocation4], 1
    %s235 = scalar_lea.sflag [#allocation4], 1
    %236 = vsyncpa %s235, 1

</llo_original>
